<compile_context>
chip_gen: v7x
topology: tpu7x:2x2x1
jax: 0.10.0
libtpu: 0.0.40
codegen_flags: <defaults>
</compile_context>

<pallas_src>
import math

import jax
import jax.numpy as jnp
from jax.experimental import pallas as pl
from jax.experimental.pallas import tpu as pltpu

LANE = 128
SUBLANE = 8


def _cdiv(a, b):
    return (a + b - 1) // b


def _round_up(n, m):
    return ((n + m - 1) // m) * m


def _pad_to(x, target, axis):
    amt = target - x.shape[axis]
    if amt <= 0:
        return x
    widths = [(0, 0)] * x.ndim
    widths[axis] = (0, amt)
    return jnp.pad(x, widths)


def critic_kernel(s_ref, a_ref, w1s_ref, w1a_ref, b1_ref,
                  w2_ref, b2_ref, w3t_ref, b3_ref, o_ref):
    """One batch tile of the critic MLP.

    h1 = relu(s @ W1s + a @ W1a + b1)   -- VPU broadcast FMAs (tiny K), f32
    h2 = relu(h1 @ W2 + b2)             -- MXU, bf16 operands, f32 accumulate
    q  = h2 . w3 + b3                   -- VPU multiply + lane reduce (n_out small)
    """
    s = s_ref[...]                       # (TB, sd) f32
    a = a_ref[...]                       # (TB, ad) f32
    w1s = w1s_ref[...]                   # (sd, F)  f32
    w1a = w1a_ref[...]                   # (ad, F)  f32

    # Layer 1: K is tiny (3 + 1), so one broadcast FMA per input column.
    h1 = b1_ref[...]                     # (1, F) -> broadcasts to (TB, F)
    for k in range(s.shape[1]):
        h1 = h1 + s[:, k:k + 1] * w1s[k:k + 1, :]
    for k in range(a.shape[1]):
        h1 = h1 + a[:, k:k + 1] * w1a[k:k + 1, :]
    h1 = jnp.maximum(h1, 0.0)

    # Layer 2: the only MXU-worthy matmul (F x F).
    h2 = jnp.dot(h1.astype(jnp.bfloat16), w2_ref[...],
                 preferred_element_type=jnp.float32) + b2_ref[...]
    h2 = jnp.maximum(h2, 0.0)

    # Layer 3: n_out useful columns (1 for DDPG) -> VPU reduce, narrow store.
    w3t = w3t_ref[...]                   # (n_out, F) f32
    n_out = w3t_ref.shape[0]
    cols = [jnp.sum(h2 * w3t[j:j + 1, :], axis=-1, keepdims=True)
            for j in range(n_out)]
    q = cols[0] if n_out == 1 else jnp.concatenate(cols, axis=-1)
    o_ref[...] = q + b3_ref[...]


def critic_forward(state, action, prepared, *, batch_tile=1024):
    """Pallas-backed equivalent of CriticNetwork.forward(state, action)."""
    w1s, w1a, b1, w2, b2, w3t, b3 = prepared["weights"]
    n_out = prepared["n_out"]
    sd, ad = w1s.shape[0], w1a.shape[0]
    F = w2.shape[0]                       # padded feature width (multiple of 128)

    B = state.shape[0]
    # Tile selection: minimize padding (overshoot < 8 rows per tile), and use
    # >= 2 tiles for large batches so v7x's 2 TensorCores both get work.
    n_tiles = max(_cdiv(B, batch_tile), 1)
    if n_tiles == 1 and B >= 128:
        n_tiles = 2
    TB = _round_up(_cdiv(B, n_tiles), SUBLANE)
    B_pad = TB * n_tiles

    # Module semantics: state.float(), action.float().  f32 straight into the
    # kernel; only row padding (if any) happens in the wrapper.
    s = _pad_to(state.astype(jnp.float32), B_pad, 0)
    a = _pad_to(action.astype(jnp.float32), B_pad, 0)

    # Constant index_map -> weights stay VMEM-resident across batch tiles.
    # (If F grows into the thousands, add pipeline_mode=pl.Buffered(1) here.)
    const = lambda shape: pl.BlockSpec(shape, lambda i: (0, 0))

    q_pad = pl.pallas_call(
        critic_kernel,
        out_shape=jax.ShapeDtypeStruct((B_pad, n_out), jnp.float32),
        grid=(n_tiles,),
        in_specs=[
            pl.BlockSpec((TB, sd), lambda i: (i, 0)),
            pl.BlockSpec((TB, ad), lambda i: (i, 0)),
            const((sd, F)), const((ad, F)), const((1, F)),
            const((F, F)), const((1, F)),
            const((n_out, F)), const((1, n_out)),
        ],
        out_specs=pl.BlockSpec((TB, n_out), lambda i: (i, 0)),
        compiler_params=pltpu.CompilerParams(
            dimension_semantics=("parallel",)),
    )(s, a, w1s, w1a, b1, w2, b2, w3t, b3)

    q = q_pad[:B]
    # torch.squeeze(q): drop all size-1 dims (n_output == 1 -> shape (B,);
    # B == 1 also drops the batch dim, matching the PyTorch module).
    return jnp.squeeze(q)


# ----------------------------- parameter init -----------------------------

def xavier_uniform(key, fan_in, fan_out, gain):
    bound = gain * math.sqrt(6.0 / (fan_in + fan_out))
    return jax.random.uniform(key, (fan_in, fan_out), jnp.float32, -bound, bound)


def linear_bias(key, fan_in, fan_out):
    # PyTorch nn.Linear default bias init: U(-1/sqrt(fan_in), 1/sqrt(fan_in)).
    bound = 1.0 / math.sqrt(fan_in)
    return jax.random.uniform(key, (1, fan_out), jnp.float32, -bound, bound)


def init_params(key, n_input, n_features, n_output):
    k = jax.random.split(key, 6)
    gain_relu = math.sqrt(2.0)
    gain_lin = 1.0
    w1 = xavier_uniform(k[0], n_input, n_features, gain_relu)
    b1 = linear_bias(k[1], n_input, n_features)
    w2 = xavier_uniform(k[2], n_features, n_features, gain_relu)
    b2 = linear_bias(k[3], n_features, n_features)
    w3 = xavier_uniform(k[4], n_features, n_output, gain_lin)
    b3 = linear_bias(k[5], n_features, n_output)
    return (w1, b1, w2, b2, w3, b3)


def prepare_params(params, state_dim):
    """One-time layout prep.

    * W1 split into state/action row blocks (concat fused into the kernel).
    * Feature dim zero-padded to a 128-lane multiple (padded lanes stay
      exactly 0 through bias/ReLU, so results are unaffected).
    * Only W2 (the F x F MXU matmul) is stored bf16; W1/W3/biases stay f32.
    * W3 stored transposed as (n_out, F) for the VPU lane-reduce in layer 3;
      the output is NOT padded to 128 lanes.
    """
    w1, b1, w2, b2, w3, b3 = params
    n_feat = w1.shape[1]
    n_out = w3.shape[1]
    F = _round_up(n_feat, LANE)

    w1p = _pad_to(w1, F, 1)
    w1s = w1p[:state_dim]
    w1a = w1p[state_dim:]
    b1p = _pad_to(b1, F, 1)
    w2p = _pad_to(_pad_to(w2, F, 0), F, 1).astype(jnp.bfloat16)
    b2p = _pad_to(b2, F, 1)
    w3t = jnp.transpose(_pad_to(w3, F, 0))          # (n_out, F)
    return {"weights": (w1s, w1a, b1p, w2p, b2p, w3t, b3), "n_out": n_out}


def _reference(state, action, prepared):
    """Plain-JAX reference using the SAME prepared weights / casts."""
    w1s, w1a, b1p, w2p, b2p, w3t, b3 = prepared["weights"]
    sf = state.astype(jnp.float32)
    af = action.astype(jnp.float32)
    h1 = jnp.maximum(sf @ w1s + af @ w1a + b1p, 0.0)
    h2 = jnp.maximum(
        jnp.dot(h1.astype(jnp.bfloat16), w2p,
                preferred_element_type=jnp.float32) + b2p, 0.0)
    q = h2 @ jnp.transpose(w3t) + b3
    return jnp.squeeze(q)


if __name__ == "__main__":
    # Pendulum-like dimensions: state dim 3, action dim 1 -> n_input = 4.
    batch = 8
    state_dim = 3
    action_dim = 1
    n_input = state_dim + action_dim
    n_features = 32
    n_output = 1

    key = jax.random.PRNGKey(0)
    k_state, k_action, k_params, k_s2, k_a2 = jax.random.split(key, 5)

    state = jax.random.normal(k_state, (batch, state_dim), jnp.float32)
    action = jax.random.normal(k_action, (batch, action_dim), jnp.float32)

    params = init_params(k_params, n_input, n_features, n_output)
    prepared = prepare_params(params, state_dim)

    # --- small (acting-path) batch ---
    q = jax.block_until_ready(critic_forward(state, action, prepared))
    assert q.shape == (batch,), q.shape
    q_ref = _reference(state, action, prepared)
    assert jnp.allclose(q, q_ref, atol=1e-3, rtol=1e-3)

    # Loose check against the original fp32 module math (only the bf16 W2
    # matmul deviates from exact fp32).
    w1, b1, w2, b2, w3, b3 = params
    x = jnp.concatenate([state, action], axis=1)
    h1f = jnp.maximum(x @ w1 + b1, 0.0)
    h2f = jnp.maximum(h1f @ w2 + b2, 0.0)
    q_f32_ref = jnp.squeeze(h2f @ w3 + b3)
    assert jnp.allclose(q, q_f32_ref, atol=2e-1, rtol=1e-1)

    # --- replay-buffer-like batch (exercises row padding + 2-tile grid) ---
    big_b = 300
    state2 = jax.random.normal(k_s2, (big_b, state_dim), jnp.float32)
    action2 = jax.random.normal(k_a2, (big_b, action_dim), jnp.float32)
    q2 = jax.block_until_ready(critic_forward(state2, action2, prepared))
    assert q2.shape == (big_b,), q2.shape
    q2_ref = _reference(state2, action2, prepared)
    assert jnp.allclose(q2, q2_ref, atol=1e-3, rtol=1e-3)

    print("KERNEL_OK")
</pallas_src>

<mosaic_0001>
module attributes {stable_mosaic.version = 11 : i64} {
  func.func @critic_kernel(%arg0: i32, %arg1: memref<8x3xf32, #tpu.memory_space<vmem>>, %arg2: memref<8x1xf32, #tpu.memory_space<vmem>>, %arg3: memref<3x128xf32, #tpu.memory_space<vmem>>, %arg4: memref<1x128xf32, #tpu.memory_space<vmem>>, %arg5: memref<1x128xf32, #tpu.memory_space<vmem>>, %arg6: memref<128x128xbf16, #tpu.memory_space<vmem>>, %arg7: memref<1x128xf32, #tpu.memory_space<vmem>>, %arg8: memref<1x128xf32, #tpu.memory_space<vmem>>, %arg9: memref<1x1xf32, #tpu.memory_space<vmem>>, %arg10: memref<8x1xf32, #tpu.memory_space<vmem>>) attributes {dimension_semantics = [#tpu.dimension_semantics<parallel>], iteration_bounds = array<i64: 1>, scalar_prefetch = 0 : i64, scratch_operands = 0 : i64, tpu.core_type = #tpu.core_type<tc>, window_params = [{transform_indices = @transform_0, window_bounds = array<i64: 8, 3>}, {transform_indices = @transform_1, window_bounds = array<i64: 8, 1>}, {pipeline_mode = #tpu.pipeline_mode<synchronous>, transform_indices = @transform_2, window_bounds = array<i64: 3, 128>}, {pipeline_mode = #tpu.pipeline_mode<synchronous>, transform_indices = @transform_3, window_bounds = array<i64: 1, 128>}, {pipeline_mode = #tpu.pipeline_mode<synchronous>, transform_indices = @transform_4, window_bounds = array<i64: 1, 128>}, {pipeline_mode = #tpu.pipeline_mode<synchronous>, transform_indices = @transform_5, window_bounds = array<i64: 128, 128>}, {pipeline_mode = #tpu.pipeline_mode<synchronous>, transform_indices = @transform_6, window_bounds = array<i64: 1, 128>}, {pipeline_mode = #tpu.pipeline_mode<synchronous>, transform_indices = @transform_7, window_bounds = array<i64: 1, 128>}, {pipeline_mode = #tpu.pipeline_mode<synchronous>, transform_indices = @transform_8, window_bounds = array<i64: 1, 1>}, {transform_indices = @transform_9, window_bounds = array<i64: 8, 1>}]} {
    %c0 = arith.constant 0 : index
    %c0_0 = arith.constant 0 : index
    %0 = vector.load %arg1[%c0, %c0_0] : memref<8x3xf32, #tpu.memory_space<vmem>>, vector<8x3xf32>
    %c0_1 = arith.constant 0 : index
    %c0_2 = arith.constant 0 : index
    %1 = vector.load %arg2[%c0_1, %c0_2] : memref<8x1xf32, #tpu.memory_space<vmem>>, vector<8x1xf32>
    %c0_3 = arith.constant 0 : index
    %c0_4 = arith.constant 0 : index
    %2 = vector.load %arg3[%c0_3, %c0_4] : memref<3x128xf32, #tpu.memory_space<vmem>>, vector<3x128xf32>
    %c0_5 = arith.constant 0 : index
    %c0_6 = arith.constant 0 : index
    %3 = vector.load %arg4[%c0_5, %c0_6] : memref<1x128xf32, #tpu.memory_space<vmem>>, vector<1x128xf32>
    %c0_7 = arith.constant 0 : index
    %c0_8 = arith.constant 0 : index
    %4 = vector.load %arg5[%c0_7, %c0_8] : memref<1x128xf32, #tpu.memory_space<vmem>>, vector<1x128xf32>
    %5 = vector.extract_strided_slice %0 {offsets = [0, 0], sizes = [8, 1], strides = [1, 1]} : vector<8x3xf32> to vector<8x1xf32>
    %6 = vector.extract_strided_slice %2 {offsets = [0, 0], sizes = [1, 128], strides = [1, 1]} : vector<3x128xf32> to vector<1x128xf32>
    %7 = vector.broadcast %5 : vector<8x1xf32> to vector<8x128xf32>
    %8 = vector.broadcast %6 : vector<1x128xf32> to vector<8x128xf32>
    %9 = arith.mulf %7, %8 : vector<8x128xf32>
    %10 = vector.broadcast %4 : vector<1x128xf32> to vector<8x128xf32>
    %11 = arith.addf %10, %9 : vector<8x128xf32>
    %12 = vector.extract_strided_slice %0 {offsets = [0, 1], sizes = [8, 1], strides = [1, 1]} : vector<8x3xf32> to vector<8x1xf32>
    %13 = vector.extract_strided_slice %2 {offsets = [1, 0], sizes = [1, 128], strides = [1, 1]} : vector<3x128xf32> to vector<1x128xf32>
    %14 = vector.broadcast %12 : vector<8x1xf32> to vector<8x128xf32>
    %15 = vector.broadcast %13 : vector<1x128xf32> to vector<8x128xf32>
    %16 = arith.mulf %14, %15 : vector<8x128xf32>
    %17 = arith.addf %11, %16 : vector<8x128xf32>
    %18 = vector.extract_strided_slice %0 {offsets = [0, 2], sizes = [8, 1], strides = [1, 1]} : vector<8x3xf32> to vector<8x1xf32>
    %19 = vector.extract_strided_slice %2 {offsets = [2, 0], sizes = [1, 128], strides = [1, 1]} : vector<3x128xf32> to vector<1x128xf32>
    %20 = vector.broadcast %18 : vector<8x1xf32> to vector<8x128xf32>
    %21 = vector.broadcast %19 : vector<1x128xf32> to vector<8x128xf32>
    %22 = arith.mulf %20, %21 : vector<8x128xf32>
    %23 = arith.addf %17, %22 : vector<8x128xf32>
    %24 = vector.broadcast %1 : vector<8x1xf32> to vector<8x128xf32>
    %25 = vector.broadcast %3 : vector<1x128xf32> to vector<8x128xf32>
    %26 = arith.mulf %24, %25 : vector<8x128xf32>
    %27 = arith.addf %23, %26 : vector<8x128xf32>
    %cst = arith.constant 0.000000e+00 : f32
    %28 = vector.broadcast %cst : f32 to vector<8x128xf32>
    %29 = arith.maximumf %27, %28 : vector<8x128xf32>
    %30 = arith.truncf %29 : vector<8x128xf32> to vector<8x128xbf16>
    %c0_9 = arith.constant 0 : index
    %c0_10 = arith.constant 0 : index
    %31 = vector.load %arg6[%c0_9, %c0_10] : memref<128x128xbf16, #tpu.memory_space<vmem>>, vector<128x128xbf16>
    %cst_11 = arith.constant dense<0.000000e+00> : vector<8x128xf32>
    %32 = tpu.matmul %30, %31, %cst_11 {dimension_numbers = #tpu.dot_dimension_numbers<[1], [0], [0], [1], [0, 0, 1, 1], [], []>} : vector<8x128xbf16>, vector<128x128xbf16>, vector<8x128xf32> -> vector<8x128xf32>
    %c0_12 = arith.constant 0 : index
    %c0_13 = arith.constant 0 : index
    %33 = vector.load %arg7[%c0_12, %c0_13] : memref<1x128xf32, #tpu.memory_space<vmem>>, vector<1x128xf32>
    %34 = vector.broadcast %33 : vector<1x128xf32> to vector<8x128xf32>
    %35 = arith.addf %32, %34 : vector<8x128xf32>
    %cst_14 = arith.constant 0.000000e+00 : f32
    %36 = vector.broadcast %cst_14 : f32 to vector<8x128xf32>
    %37 = arith.maximumf %35, %36 : vector<8x128xf32>
    %c0_15 = arith.constant 0 : index
    %c0_16 = arith.constant 0 : index
    %38 = vector.load %arg8[%c0_15, %c0_16] : memref<1x128xf32, #tpu.memory_space<vmem>>, vector<1x128xf32>
    %39 = vector.broadcast %38 : vector<1x128xf32> to vector<8x128xf32>
    %40 = arith.mulf %37, %39 : vector<8x128xf32>
    %cst_17 = arith.constant dense<0.000000e+00> : vector<8xf32>
    %41 = vector.multi_reduction <add>, %40, %cst_17 [1] : vector<8x128xf32> to vector<8xf32>
    %42 = vector.shape_cast %41 : vector<8xf32> to vector<8x1xf32>
    %c0_18 = arith.constant 0 : index
    %c0_19 = arith.constant 0 : index
    %43 = vector.load %arg9[%c0_18, %c0_19] : memref<1x1xf32, #tpu.memory_space<vmem>>, vector<1x1xf32>
    %44 = vector.broadcast %43 : vector<1x1xf32> to vector<8x1xf32>
    %45 = arith.addf %42, %44 : vector<8x1xf32>
    %c0_20 = arith.constant 0 : index
    %c0_21 = arith.constant 0 : index
    %46 = vector.load %arg10[%c0_20, %c0_21] : memref<8x1xf32, #tpu.memory_space<vmem>>, vector<8x1xf32>
    tpu.vector_store %arg10[%c0_20, %c0_21], %45 {strides = array<i32>} : memref<8x1xf32, #tpu.memory_space<vmem>>, vector<8x1xf32>,
    return
  }
  func.func @transform_0(%arg0: i32) -> (i32, i32) {
    %c0_i32 = arith.constant 0 : i32
    %c0_i32_0 = arith.constant 0 : i32
    return %arg0, %c0_i32 : i32, i32
  }
  func.func @transform_1(%arg0: i32) -> (i32, i32) {
    %c0_i32 = arith.constant 0 : i32
    %c0_i32_0 = arith.constant 0 : i32
    return %arg0, %c0_i32 : i32, i32
  }
  func.func @transform_2(%arg0: i32) -> (i32, i32) {
    %c0_i32 = arith.constant 0 : i32
    %c0_i32_0 = arith.constant 0 : i32
    %c0_i32_1 = arith.constant 0 : i32
    return %c0_i32, %c0_i32_0 : i32, i32
  }
  func.func @transform_3(%arg0: i32) -> (i32, i32) {
    %c0_i32 = arith.constant 0 : i32
    %c0_i32_0 = arith.constant 0 : i32
    %c0_i32_1 = arith.constant 0 : i32
    return %c0_i32, %c0_i32_0 : i32, i32
  }
  func.func @transform_4(%arg0: i32) -> (i32, i32) {
    %c0_i32 = arith.constant 0 : i32
    %c0_i32_0 = arith.constant 0 : i32
    %c0_i32_1 = arith.constant 0 : i32
    return %c0_i32, %c0_i32_0 : i32, i32
  }
  func.func @transform_5(%arg0: i32) -> (i32, i32) {
    %c0_i32 = arith.constant 0 : i32
    %c0_i32_0 = arith.constant 0 : i32
    %c0_i32_1 = arith.constant 0 : i32
    return %c0_i32, %c0_i32_0 : i32, i32
  }
  func.func @transform_6(%arg0: i32) -> (i32, i32) {
    %c0_i32 = arith.constant 0 : i32
    %c0_i32_0 = arith.constant 0 : i32
    %c0_i32_1 = arith.constant 0 : i32
    return %c0_i32, %c0_i32_0 : i32, i32
  }
  func.func @transform_7(%arg0: i32) -> (i32, i32) {
    %c0_i32 = arith.constant 0 : i32
    %c0_i32_0 = arith.constant 0 : i32
    %c0_i32_1 = arith.constant 0 : i32
    return %c0_i32, %c0_i32_0 : i32, i32
  }
  func.func @transform_8(%arg0: i32) -> (i32, i32) {
    %c0_i32 = arith.constant 0 : i32
    %c0_i32_0 = arith.constant 0 : i32
    %c0_i32_1 = arith.constant 0 : i32
    return %c0_i32, %c0_i32_0 : i32, i32
  }
  func.func @transform_9(%arg0: i32) -> (i32, i32) {
    %c0_i32 = arith.constant 0 : i32
    %c0_i32_0 = arith.constant 0 : i32
    return %arg0, %c0_i32 : i32, i32
  }
}

</mosaic_0001>

<llo_original>
// kernel: tpu_custom_call.1
$region0: #{tpu_custom_call.1}
  #allocation0 [shape = 'u32[]', space=smem, size = 0x4, offset = 0x4, fixed_abs, tag = 'smem constant byte address 0x4 - core index']
  #allocation1 [shape = 'u32[144,128]{1,0:T(1,128)}', space=vmem, size = 0x12000, scoped, tag = 'internal scratch']
  #allocation2 [shape = 'f32[1,1]{1,0:T(1,128)S(1)}', space=vmem, size = 0x200, scoped, tag = 'scoped memory for tpu_custom_call.1']
  %s0 = inlined_call_operand.vmem [shape: f32[8,3], index: 0, kind: input, shape index: {}]
  %s1 = inlined_call_operand.vmem [shape: f32[8,1], index: 1, kind: input, shape index: {}]
  %s2 = inlined_call_operand.vmem [shape: f32[3,128], index: 2, kind: input, shape index: {}]
  %s3 = inlined_call_operand.vmem [shape: f32[1,128], index: 3, kind: input, shape index: {}]
  %s4 = inlined_call_operand.vmem [shape: f32[1,128], index: 4, kind: input, shape index: {}]
  %s5 = inlined_call_operand.hbm [shape: bf16[128,128], index: 5, kind: input, shape index: {}]
  %s6 = inlined_call_operand.vmem [shape: f32[1,128], index: 6, kind: input, shape index: {}]
  %s7 = inlined_call_operand.vmem [shape: f32[1,128], index: 7, kind: input, shape index: {}]
  %s8 = inlined_call_operand.<no memory space> [shape: f32[1,1], index: 8, kind: input, shape index: {}]
  %s9 = inlined_call_operand.vmem [shape: f32[8,1], index: 9, kind: output, shape index: {}]
  %s10 = sld [smem:[#allocation0]]
  $region50: #{tpu_custom_call.1} parent=0
    _
  %s12 = ssub.s32 1, %s10
  %s13 = scalar_select 0, %s12, %s10
  %v14 = vstv %s8
  %15 = vst [vmem:[#allocation2] sm:$0x1] %v14
  $region1: #{tpu_custom_call.1} parent=0
    #allocation3 [shape = 'u8[32768]{0}', space=vmem, size = 0x8000, scoped, tag = 'input window, operand 5, single buffered']
    #allocation4 [shape = 's32[1]{0}', space=sflag, size = 0x4, scoped, tag = 'scoped memory for tpu_custom_call.1']
    %16 = vsyncpa [#allocation4], 0
    // Predicated region
    $region2: #{tpu_custom_call.1} parent=1 // pred_check
      _
    $region3: #{tpu_custom_call.1} parent=1 // pred_check_branch
      %18 = sbr.rel (0) target = $region5
    $region4: #{tpu_custom_call.1} parent=1 // pred_region
      _
    $region5: #{tpu_custom_call.1} parent=1 // pred_fallthru
      _
    // Predicated region
    $region6: #{tpu_custom_call.1} parent=1 // pred_check
      _
    $region7: #{tpu_custom_call.1} parent=1 // pred_check_branch
      %20 = sbr.rel (0) target = $region9
    $region8: #{tpu_custom_call.1} parent=1 // pred_region
      _
    $region9: #{tpu_custom_call.1} parent=1 // pred_fallthru
      _
    // Predicated region
    $region10: #{tpu_custom_call.1} parent=1 // pred_check
      _
    $region11: #{tpu_custom_call.1} parent=1 // pred_check_branch
      %22 = sbr.rel (0) target = $region13
    $region12: #{tpu_custom_call.1} parent=1 // pred_region
      _
    $region13: #{tpu_custom_call.1} parent=1 // pred_fallthru
      _
    // Predicated region
    $region14: #{tpu_custom_call.1} parent=1 // pred_check
      _
    $region15: #{tpu_custom_call.1} parent=1 // pred_check_branch
      %24 = sbr.rel (0) target = $region17
    $region16: #{tpu_custom_call.1} parent=1 // pred_region
      _
    $region17: #{tpu_custom_call.1} parent=1 // pred_fallthru
      _
    // Predicated region
    $region18: #{tpu_custom_call.1} parent=1 // pred_check
      _
    $region19: #{tpu_custom_call.1} parent=1 // pred_check_branch
      %26 = sbr.rel (0) target = $region21
    $region20: #{tpu_custom_call.1} parent=1 // pred_region
      _
    $region21: #{tpu_custom_call.1} parent=1 // pred_fallthru
      _
    // Predicated region
    $region22: #{tpu_custom_call.1} parent=1 // pred_check
      _
    $region23: #{tpu_custom_call.1} parent=1 // pred_check_branch
      %28 = sbr.rel (0) target = $region25
    $region24: #{tpu_custom_call.1} parent=1 // pred_region
      %s30 = ssub.s32 1024, 1024
      %31 = vsyncadd [#allocation4], %s30
      %s32 = sshll.u32 [#allocation3], 4
      %s33 = int_to_ptr.vmem [resolvable:$true] %s32
      %38 = dma.hbm_to_vmem [thread:$0]  %s5, 1024, %s33, [#allocation4], 64, 64, 4
    $region25: #{tpu_custom_call.1} parent=1 // pred_fallthru
      _
    // Predicated region
    $region26: #{tpu_custom_call.1} parent=1 // pred_check
      _
    $region27: #{tpu_custom_call.1} parent=1 // pred_check_branch
      %40 = sbr.rel (0) target = $region29
    $region28: #{tpu_custom_call.1} parent=1 // pred_region
      _
    $region29: #{tpu_custom_call.1} parent=1 // pred_fallthru
      _
    // Predicated region
    $region30: #{tpu_custom_call.1} parent=1 // pred_check
      _
    $region31: #{tpu_custom_call.1} parent=1 // pred_check_branch
      %42 = sbr.rel (0) target = $region33
    $region32: #{tpu_custom_call.1} parent=1 // pred_region
      _
    $region33: #{tpu_custom_call.1} parent=1 // pred_fallthru
      _
    // Predicated region
    $region34: #{tpu_custom_call.1} parent=1 // pred_check
      _
    $region35: #{tpu_custom_call.1} parent=1 // pred_check_branch
      %44 = sbr.rel (0) target = $region37
    $region36: #{tpu_custom_call.1} parent=1 // pred_region
      _
    $region37: #{tpu_custom_call.1} parent=1 // pred_fallthru
      _
    // Predicated region
    $region38: #{tpu_custom_call.1} parent=1 // pred_check
      _
    $region39: #{tpu_custom_call.1} parent=1 // pred_check_branch
      %46 = sbr.rel (0) target = $region41
    $region40: #{tpu_custom_call.1} parent=1 // pred_region
      %47 = dma.done [#allocation4], 1024
    $region41: #{tpu_custom_call.1} parent=1 // pred_fallthru
      _
    %v49 = vld [vmem:[%s0] sm:$0xff]
    %v50 = vld [vmem:[%s1] sm:$0xff]
    %v51 = vld [vmem:[%s2] sm:$0x7]
    %v52 = vld [vmem:[%s3] sm:$0x1]
    %v53 = vld [vmem:[%s4] sm:$0x1]
    %55 = vset.pattern.permute.xlu0 0
    %56 = vperm.xlu0 %55, %v49
    %v57 = vpop.permute.xlu0 %56
    %v59 = vlaneseq
    %v60 = vshrl.u32 %v59, 7
    %v61 = vsub.s32 0, %v60
    %v62 = vrot.slane %v51, %v61
    %v63 = vmul.f32 %v57, %v62
    %v65 = vlaneseq
    %v66 = vshrl.u32 %v65, 7
    %v67 = vsub.s32 0, %v66
    %v68 = vrot.slane %v53, %v67
    %v70 = vadd.f32 %v68, %v63
    %71 = vset.pattern.permute.xlu0 1
    %72 = vperm.xlu0 %71, %v49
    %v73 = vpop.permute.xlu0 %72
    %v75 = vlaneseq
    %v76 = vshrl.u32 %v75, 7
    %v77 = vsub.s32 1, %v76
    %v78 = vrot.slane %v51, %v77
    %v79 = vmul.f32 %v73, %v78
    %v80 = vadd.f32 %v70, %v79
    %81 = vset.pattern.permute.xlu0 2
    %82 = vperm.xlu0 %81, %v49
    %v83 = vpop.permute.xlu0 %82
    %v85 = vlaneseq
    %v86 = vshrl.u32 %v85, 7
    %v87 = vsub.s32 2, %v86
    %v88 = vrot.slane %v51, %v87
    %v89 = vmul.f32 %v83, %v88
    %v90 = vadd.f32 %v80, %v89
    %92 = vset.pattern.permute.xlu0 0
    %93 = vperm.xlu0 %92, %v50
    %v94 = vpop.permute.xlu0 %93
    %v97 = vlaneseq
    %v98 = vshrl.u32 %v97, 7
    %v99 = vsub.s32 0, %v98
    %v100 = vrot.slane %v52, %v99
    %v102 = vmul.f32 %v94, %v100
    %v103 = vadd.f32 %v90, %v102
    %v104 = vmax.f32 %v103, 0.0
    %v105 = vpack.c.bf16 %v104, %v104
    %v106 = vld [vmem:[#allocation3] sm:$0xf]
    %v107 = vld [vmem:[#allocation3 + $0x4] sm:$0xf]
    %v108 = vld [vmem:[#allocation3 + $0x8] sm:$0xf]
    %v109 = vld [vmem:[#allocation3 + $0xc] sm:$0xf]
    %v110 = vld [vmem:[#allocation3 + $0x10] sm:$0xf]
    %v111 = vld [vmem:[#allocation3 + $0x14] sm:$0xf]
    %v112 = vld [vmem:[#allocation3 + $0x18] sm:$0xf]
    %v113 = vld [vmem:[#allocation3 + $0x1c] sm:$0xf]
    %v114 = vld [vmem:[#allocation3 + $0x20] sm:$0xf]
    %v115 = vld [vmem:[#allocation3 + $0x24] sm:$0xf]
    %v116 = vld [vmem:[#allocation3 + $0x28] sm:$0xf]
    %v117 = vld [vmem:[#allocation3 + $0x2c] sm:$0xf]
    %v118 = vld [vmem:[#allocation3 + $0x30] sm:$0xf]
    %v119 = vld [vmem:[#allocation3 + $0x34] sm:$0xf]
    %v120 = vld [vmem:[#allocation3 + $0x38] sm:$0xf]
    %v121 = vld [vmem:[#allocation3 + $0x3c] sm:$0xf]
    %v122 = vld [vmem:[%s6] sm:$0x1]
    %v124 = vlaneseq
    %v125 = vshrl.u32 %v124, 7
    %v126 = vsub.s32 0, %v125
    %v127 = vrot.slane %v122, %v126
    %v145 = vunpack.c.l.b16 %v106
    %v146 = vunpack.c.l.b16 %v107
    %v147 = vunpack.c.l.b16 %v108
    %v148 = vunpack.c.l.b16 %v109
    %v149 = vunpack.c.l.b16 %v110
    %v150 = vunpack.c.l.b16 %v111
    %v151 = vunpack.c.l.b16 %v112
    %v152 = vunpack.c.l.b16 %v113
    %v153 = vunpack.c.l.b16 %v114
    %v154 = vunpack.c.l.b16 %v115
    %v155 = vunpack.c.l.b16 %v116
    %v156 = vunpack.c.l.b16 %v117
    %v157 = vunpack.c.l.b16 %v118
    %v158 = vunpack.c.l.b16 %v119
    %v159 = vunpack.c.l.b16 %v120
    %v160 = vunpack.c.l.b16 %v121
    %v161 = vpack.c.b16 %v146, %v145
    %v162 = vpack.c.b16 %v148, %v147
    %v163 = vpack.c.b16 %v150, %v149
    %v164 = vpack.c.b16 %v152, %v151
    %v165 = vpack.c.b16 %v154, %v153
    %v166 = vpack.c.b16 %v156, %v155
    %v167 = vpack.c.b16 %v158, %v157
    %v168 = vpack.c.b16 %v160, %v159
    %177 = vmatprep.subr.bf16.mxu0 0
    %178 = vmatpush1.bf16.msra.mxu0 %v161
    %179 = vmatprep.subr.bf16.mxu0 0
    %180 = vmatpush1.bf16.msra.mxu0 %v162
    %181 = vmatprep.subr.bf16.mxu0 0
    %182 = vmatpush1.bf16.msra.mxu0 %v163
    %183 = vmatprep.subr.bf16.mxu0 0
    %184 = vmatpush1.bf16.msra.mxu0 %v164
    %185 = vmatprep.subr.bf16.mxu0 0
    %186 = vmatpush1.bf16.msra.mxu0 %v165
    %187 = vmatprep.subr.bf16.mxu0 0
    %188 = vmatpush1.bf16.msra.mxu0 %v166
    %189 = vmatprep.subr.bf16.mxu0 0
    %190 = vmatpush1.bf16.msra.mxu0 %v167
    %191 = vmatprep.subr.bf16.mxu0 0
    %192 = vmatpush1.bf16.msra.mxu0 %v168
    %193 = vmatprep.subr.bf16.mxu0 0
    %194 = vmatpush1.bf16.msra.mxu0 0
    %195 = vmatprep.subr.bf16.mxu0 0
    %196 = vmatpush1.bf16.msra.mxu0 0
    %197 = vmatprep.subr.bf16.mxu0 0
    %198 = vmatpush1.bf16.msra.mxu0 0
    %199 = vmatprep.subr.bf16.mxu0 0
    %200 = vmatpush1.bf16.msra.mxu0 0
    %201 = vmatprep.subr.bf16.mxu0 0
    %202 = vmatpush1.bf16.msra.mxu0 0
    %203 = vmatprep.subr.bf16.mxu0 0
    %204 = vmatpush1.bf16.msra.mxu0 0
    %205 = vmatprep.subr.bf16.mxu0 0
    %206 = vmatpush1.bf16.msra.mxu0 0
    %207 = vmatprep.subr.bf16.mxu0 0
    %208 = vmatpush1.bf16.msra.mxu0 0
    %209 = vmatprep.mubr.bf16.mxu0 0
    %210 = vmatmul.mubr.bf16.gmra.mrb[0].mxu0 %v105
    %v211 = vpop.f32.mrb[0].mxu0
    %v212 = vadd.f32 %v127, %v211
    %v213 = vpop.f32.mrb[0].mxu0
    %v214 = vpop.f32.mrb[0].mxu0
    %v215 = vpop.f32.mrb[0].mxu0
    %216 = vdwg.mxu0
    %v217 = vmax.f32 %v212, 0.0
    %v218 = vld [vmem:[%s7] sm:$0x1]
    %v220 = vlaneseq
    %v221 = vshrl.u32 %v220, 7
    %v222 = vsub.s32 0, %v221
    %v223 = vrot.slane %v218, %v222
    %v225 = vmul.f32 %v217, %v223
    %226 = vadd.xlane.f32.xlu0 %v225
    %v227 = vpop.xlane.xlu0 %226
    %v228 = vld [vmem:[#allocation2] sm:$0x1]
    %v230 = vlaneseq
    %v231 = vshrl.u32 %v230, 7
    %v232 = vsub.s32 0, %v231
    %v233 = vrot.slane %v228, %v232
    %v235 = vadd.f32 %v227, %v233
    %vm236 = vcmask 7168
    %237 = vst.msk [vmem:[%s9] sm:$0xff] %vm236, %v235
    // Predicated region
    $region42: #{tpu_custom_call.1} parent=1 // pred_check
      _
    $region43: #{tpu_custom_call.1} parent=1 // pred_check_branch
      %239 = sbr.rel (0) target = $region45
    $region44: #{tpu_custom_call.1} parent=1 // pred_region
      _
    $region45: #{tpu_custom_call.1} parent=1 // pred_fallthru
      _
    // Predicated region
    $region46: #{tpu_custom_call.1} parent=1 // pred_check
      _
    $region47: #{tpu_custom_call.1} parent=1 // pred_check_branch
      %241 = sbr.rel (0) target = $region49
    $region48: #{tpu_custom_call.1} parent=1 // pred_region
      _
    $region49: #{tpu_custom_call.1} parent=1 // pred_fallthru
      _
    %242 = vsyncpa [#allocation4], 1

</llo_original>
